<compile_context>
chip_gen: v7x
topology: tpu7x:2x2x1
jax: 0.10.0
libtpu: 0.0.40
codegen_flags: <defaults>
</compile_context>

<pallas_src>
import jax
import jax.numpy as jnp
from jax.experimental import pallas as pl
from jax.experimental.pallas import tpu as pltpu


def _round_up(x, m):
    return ((x + m - 1) // m) * m


def local_critic_kernel(as_ref, ai_ref, w_a_ref, b_a_ref, w_i_ref, b_i_ref,
                        w_v_ref, b_v_ref, w_o_ref, b_o_ref, out_ref):
    # Branch MLPs: two MXU dots with real data (no block-diagonal zero padding).
    # Inputs may be bf16 (weights cast to match in the wrapper); accumulate in f32.
    h_a = jnp.dot(as_ref[...], w_a_ref[...],
                  preferred_element_type=jnp.float32) + b_a_ref[...]
    h_a = jnp.maximum(h_a, 0.0)
    h_i = jnp.dot(ai_ref[...], w_i_ref[...],
                  preferred_element_type=jnp.float32) + b_i_ref[...]
    h_i = jnp.maximum(h_i, 0.0)

    # In-kernel concat (lane shuffle on the XLU, which has slack here).
    concat = jnp.concatenate([h_a, h_i], axis=-1)               # (bm, 2H) f32

    # Value hidden layer on the MXU, reusing the in-vreg concat (no VMEM round trip).
    h_v = jnp.dot(concat, w_v_ref[...],
                  preferred_element_type=jnp.float32) + b_v_ref[...]
    h_v = jnp.maximum(h_v, 0.0)

    # (hidden -> 1) head: VPU multiply + lane reduce instead of a 1-column MXU dot.
    # b_o is a scalar living in SMEM.
    v = jnp.sum(h_v * w_o_ref[...], axis=-1, keepdims=True) + b_o_ref[0, 0]

    # Single fused, lane-dense output slab (unmasked vst):
    #   lanes [0, 2H)  -> agent_concat_state
    #   lane   2H      -> v   (broadcast fills the remaining pad lanes)
    rows = concat.shape[0]
    pad = out_ref.shape[-1] - concat.shape[-1]
    slab = jnp.concatenate([concat, jnp.broadcast_to(v, (rows, pad))], axis=-1)
    out_ref[...] = slab.astype(out_ref.dtype)


def local_critic_forward(agent_state, agent_info, params, *,
                         block_batch=4096, input_dtype=None):
    """LocalCritic forward as one batch-tiled Pallas kernel.

    Returns (v, agent_concat_state) with the same semantics as the PyTorch module.
    `input_dtype=jnp.bfloat16` halves the HBM read of the activations (f32 accumulate).
    """
    B, S = agent_state.shape
    I = agent_info.shape[1]
    H = params["w_a"].shape[1]
    F_cat = 2 * H
    slab_w = _round_up(F_cat + 1, 128)

    dtype = input_dtype if input_dtype is not None else agent_state.dtype
    x_a = agent_state.astype(dtype)
    x_i = agent_info.astype(dtype)
    w_a = params["w_a"].astype(dtype)
    w_i = params["w_i"].astype(dtype)
    # w_o as a (1, H) row for the VPU head; prepare_params precomputes it once.
    w_o_row = params.get("w_o_row", params["w_o"].T)

    # ---- batch tiling: no wrapper-side pad; Pallas handles the ragged last block.
    bm = min(block_batch, _round_up(B, 8))
    if B >= 1024:
        # Prefer >= 2 grid steps so both v7x TensorCores get work (harmless on 1-TC chips).
        bm = min(bm, _round_up(pl.cdiv(B, 2), 8))
    grid = (pl.cdiv(B, bm),)

    def full2d(r, c):
        # Whole (small) parameter resident in VMEM; same block for every tile.
        return pl.BlockSpec((r, c), lambda i: (0, 0))

    out = pl.pallas_call(
        local_critic_kernel,
        out_shape=jax.ShapeDtypeStruct((B, slab_w), jnp.float32),
        grid=grid,
        in_specs=[
            pl.BlockSpec((bm, S), lambda i: (i, 0)),                 # agent_state tile
            pl.BlockSpec((bm, I), lambda i: (i, 0)),                 # agent_info tile
            full2d(S, H), full2d(1, H),                              # w_a, b_a
            full2d(I, H), full2d(1, H),                              # w_i, b_i
            full2d(F_cat, H), full2d(1, H),                          # w_v, b_v
            full2d(1, H),                                            # w_o row
            pl.BlockSpec(memory_space=pltpu.MemorySpace.SMEM),       # b_o scalar
        ],
        out_specs=pl.BlockSpec((bm, slab_w), lambda i: (i, 0)),
        compiler_params=pltpu.CompilerParams(
            dimension_semantics=("parallel",),
            vmem_limit_bytes=32 * 1024 * 1024),
    )(x_a, x_i, w_a, params["b_a"], w_i, params["b_i"],
      params["w_v"], params["b_v"], w_o_row, params["b_o"])

    agent_concat_state = out[:, :F_cat]
    v = out[:, F_cat:F_cat + 1]
    return v, agent_concat_state


def init_params(key, agent_state_size, info_size, hidden_size):
    """Deterministic synthetic parameters (same shapes as the nn.Linear layers)."""
    ks = jax.random.split(key, 8)

    def lin(kw, kb, fan_in, fan_out):
        lim = 1.0 / jnp.sqrt(jnp.float32(fan_in))
        w = jax.random.uniform(kw, (fan_in, fan_out), jnp.float32, -lim, lim)
        b = jax.random.uniform(kb, (1, fan_out), jnp.float32, -lim, lim)
        return w, b

    w_a, b_a = lin(ks[0], ks[1], agent_state_size, hidden_size)
    w_i, b_i = lin(ks[2], ks[3], info_size, hidden_size)
    w_v, b_v = lin(ks[4], ks[5], 2 * hidden_size, hidden_size)
    w_o, b_o = lin(ks[6], ks[7], hidden_size, 1)
    return dict(w_a=w_a, b_a=b_a, w_i=w_i, b_i=b_i,
                w_v=w_v, b_v=b_v, w_o=w_o, b_o=b_o)


def prepare_params(params):
    """One-time packing (hoisted out of the per-call wrapper)."""
    p = dict(params)
    p["w_o_row"] = params["w_o"].T            # (1, H) row for the VPU head
    return p


def reference_forward(agent_state, agent_info, p):
    """Pure-JAX reference mirroring the PyTorch forward exactly."""
    h_a = jax.nn.relu(agent_state @ p["w_a"] + p["b_a"])
    h_i = jax.nn.relu(agent_info @ p["w_i"] + p["b_i"])
    concat = jnp.concatenate([h_a, h_i], axis=1)
    h_v = jax.nn.relu(concat @ p["w_v"] + p["b_v"])
    v = h_v @ p["w_o"] + p["b_o"]
    return v, concat


if __name__ == "__main__":
    # Small shapes consistent with the module config
    batch = 8
    agent_state_size = 16
    info_size = 12
    hidden_size = 32

    key = jax.random.PRNGKey(0)
    k_state, k_info, k_params = jax.random.split(key, 3)

    agent_state = jax.random.normal(k_state, (batch, agent_state_size), jnp.float32)
    agent_info = jax.random.normal(k_info, (batch, info_size), jnp.float32)
    params = prepare_params(
        init_params(k_params, agent_state_size, info_size, hidden_size))

    # f32 path — bitwise-faithful to the PyTorch forward (tight tolerance).
    v, concat_state = local_critic_forward(agent_state, agent_info, params)
    jax.block_until_ready((v, concat_state))

    v_ref, concat_ref = reference_forward(agent_state, agent_info, params)
    assert v.shape == (batch, 1)
    assert concat_state.shape == (batch, 2 * hidden_size)
    assert jnp.allclose(concat_state, concat_ref, atol=1e-5, rtol=1e-5)
    assert jnp.allclose(v, v_ref, atol=1e-5, rtol=1e-5)

    # bf16 input path — halves the dominant HBM read; f32 accumulation (loose check).
    v_bf, concat_bf = local_critic_forward(agent_state, agent_info, params,
                                           input_dtype=jnp.bfloat16)
    jax.block_until_ready((v_bf, concat_bf))
    assert jnp.allclose(concat_bf, concat_ref, atol=1e-1, rtol=1e-1)
    assert jnp.allclose(v_bf, v_ref, atol=1e-1, rtol=1e-1)

    print("KERNEL_OK")
</pallas_src>

<mosaic_0001>
module attributes {stable_mosaic.version = 11 : i64} {
  func.func @local_critic_kernel(%arg0: i32, %arg1: memref<8x16xf32, #tpu.memory_space<vmem>>, %arg2: memref<8x12xf32, #tpu.memory_space<vmem>>, %arg3: memref<16x32xf32, #tpu.memory_space<vmem>>, %arg4: memref<1x32xf32, #tpu.memory_space<vmem>>, %arg5: memref<12x32xf32, #tpu.memory_space<vmem>>, %arg6: memref<1x32xf32, #tpu.memory_space<vmem>>, %arg7: memref<64x32xf32, #tpu.memory_space<vmem>>, %arg8: memref<1x32xf32, #tpu.memory_space<vmem>>, %arg9: memref<1x32xf32, #tpu.memory_space<vmem>>, %arg10: memref<1x1xf32, #tpu.memory_space<smem>>, %arg11: memref<8x128xf32, #tpu.memory_space<vmem>>) attributes {dimension_semantics = [#tpu.dimension_semantics<parallel>], iteration_bounds = array<i64: 1>, scalar_prefetch = 0 : i64, scratch_operands = 0 : i64, tpu.core_type = #tpu.core_type<tc>, window_params = [{transform_indices = @transform_0, window_bounds = array<i64: 8, 16>}, {transform_indices = @transform_1, window_bounds = array<i64: 8, 12>}, {pipeline_mode = #tpu.pipeline_mode<synchronous>, transform_indices = @transform_2, window_bounds = array<i64: 16, 32>}, {pipeline_mode = #tpu.pipeline_mode<synchronous>, transform_indices = @transform_3, window_bounds = array<i64: 1, 32>}, {pipeline_mode = #tpu.pipeline_mode<synchronous>, transform_indices = @transform_4, window_bounds = array<i64: 12, 32>}, {pipeline_mode = #tpu.pipeline_mode<synchronous>, transform_indices = @transform_5, window_bounds = array<i64: 1, 32>}, {pipeline_mode = #tpu.pipeline_mode<synchronous>, transform_indices = @transform_6, window_bounds = array<i64: 64, 32>}, {pipeline_mode = #tpu.pipeline_mode<synchronous>, transform_indices = @transform_7, window_bounds = array<i64: 1, 32>}, {pipeline_mode = #tpu.pipeline_mode<synchronous>, transform_indices = @transform_8, window_bounds = array<i64: 1, 32>}, {transform_indices = @transform_9, window_bounds = array<i64: 1, 1>}, {transform_indices = @transform_10, window_bounds = array<i64: 8, 128>}]} {
    %c0 = arith.constant 0 : index
    %c0_0 = arith.constant 0 : index
    %0 = vector.load %arg1[%c0, %c0_0] : memref<8x16xf32, #tpu.memory_space<vmem>>, vector<8x16xf32>
    %c0_1 = arith.constant 0 : index
    %c0_2 = arith.constant 0 : index
    %1 = vector.load %arg3[%c0_1, %c0_2] : memref<16x32xf32, #tpu.memory_space<vmem>>, vector<16x32xf32>
    %cst = arith.constant dense<0.000000e+00> : vector<8x32xf32>
    %2 = tpu.matmul %0, %1, %cst {dimension_numbers = #tpu.dot_dimension_numbers<[1], [0], [0], [1], [0, 0, 1, 1], [], []>} : vector<8x16xf32>, vector<16x32xf32>, vector<8x32xf32> -> vector<8x32xf32>
    %c0_3 = arith.constant 0 : index
    %c0_4 = arith.constant 0 : index
    %3 = vector.load %arg4[%c0_3, %c0_4] : memref<1x32xf32, #tpu.memory_space<vmem>>, vector<1x32xf32>
    %4 = vector.broadcast %3 : vector<1x32xf32> to vector<8x32xf32>
    %5 = arith.addf %2, %4 : vector<8x32xf32>
    %cst_5 = arith.constant 0.000000e+00 : f32
    %6 = vector.broadcast %cst_5 : f32 to vector<8x32xf32>
    %7 = arith.maximumf %5, %6 : vector<8x32xf32>
    %c0_6 = arith.constant 0 : index
    %c0_7 = arith.constant 0 : index
    %8 = vector.load %arg2[%c0_6, %c0_7] : memref<8x12xf32, #tpu.memory_space<vmem>>, vector<8x12xf32>
    %c0_8 = arith.constant 0 : index
    %c0_9 = arith.constant 0 : index
    %9 = vector.load %arg5[%c0_8, %c0_9] : memref<12x32xf32, #tpu.memory_space<vmem>>, vector<12x32xf32>
    %cst_10 = arith.constant dense<0.000000e+00> : vector<8x32xf32>
    %10 = tpu.matmul %8, %9, %cst_10 {dimension_numbers = #tpu.dot_dimension_numbers<[1], [0], [0], [1], [0, 0, 1, 1], [], []>} : vector<8x12xf32>, vector<12x32xf32>, vector<8x32xf32> -> vector<8x32xf32>
    %c0_11 = arith.constant 0 : index
    %c0_12 = arith.constant 0 : index
    %11 = vector.load %arg6[%c0_11, %c0_12] : memref<1x32xf32, #tpu.memory_space<vmem>>, vector<1x32xf32>
    %12 = vector.broadcast %11 : vector<1x32xf32> to vector<8x32xf32>
    %13 = arith.addf %10, %12 : vector<8x32xf32>
    %cst_13 = arith.constant 0.000000e+00 : f32
    %14 = vector.broadcast %cst_13 : f32 to vector<8x32xf32>
    %15 = arith.maximumf %13, %14 : vector<8x32xf32>
    %16 = tpu.concatenate %7, %15 in 1 : vector<8x32xf32>, vector<8x32xf32> -> vector<8x64xf32>
    %c0_14 = arith.constant 0 : index
    %c0_15 = arith.constant 0 : index
    %17 = vector.load %arg7[%c0_14, %c0_15] : memref<64x32xf32, #tpu.memory_space<vmem>>, vector<64x32xf32>
    %cst_16 = arith.constant dense<0.000000e+00> : vector<8x32xf32>
    %18 = tpu.matmul %16, %17, %cst_16 {dimension_numbers = #tpu.dot_dimension_numbers<[1], [0], [0], [1], [0, 0, 1, 1], [], []>} : vector<8x64xf32>, vector<64x32xf32>, vector<8x32xf32> -> vector<8x32xf32>
    %c0_17 = arith.constant 0 : index
    %c0_18 = arith.constant 0 : index
    %19 = vector.load %arg8[%c0_17, %c0_18] : memref<1x32xf32, #tpu.memory_space<vmem>>, vector<1x32xf32>
    %20 = vector.broadcast %19 : vector<1x32xf32> to vector<8x32xf32>
    %21 = arith.addf %18, %20 : vector<8x32xf32>
    %cst_19 = arith.constant 0.000000e+00 : f32
    %22 = vector.broadcast %cst_19 : f32 to vector<8x32xf32>
    %23 = arith.maximumf %21, %22 : vector<8x32xf32>
    %c0_20 = arith.constant 0 : index
    %c0_21 = arith.constant 0 : index
    %24 = vector.load %arg9[%c0_20, %c0_21] : memref<1x32xf32, #tpu.memory_space<vmem>>, vector<1x32xf32>
    %25 = vector.broadcast %24 : vector<1x32xf32> to vector<8x32xf32>
    %26 = arith.mulf %23, %25 : vector<8x32xf32>
    %cst_22 = arith.constant dense<0.000000e+00> : vector<8xf32>
    %27 = vector.multi_reduction <add>, %26, %cst_22 [1] : vector<8x32xf32> to vector<8xf32>
    %28 = vector.shape_cast %27 : vector<8xf32> to vector<8x1xf32>
    %c0_23 = arith.constant 0 : index
    %c0_24 = arith.constant 0 : index
    %29 = memref.load %arg10[%c0_23, %c0_24] : memref<1x1xf32, #tpu.memory_space<smem>>
    %30 = vector.broadcast %29 : f32 to vector<8x1xf32>
    %31 = arith.addf %28, %30 : vector<8x1xf32>
    %32 = vector.shape_cast %31 : vector<8x1xf32> to vector<8x1xf32>
    %33 = vector.broadcast %32 : vector<8x1xf32> to vector<8x64xf32>
    %34 = tpu.concatenate %16, %33 in 1 : vector<8x64xf32>, vector<8x64xf32> -> vector<8x128xf32>
    %c0_25 = arith.constant 0 : index
    %c0_26 = arith.constant 0 : index
    %35 = vector.load %arg11[%c0_25, %c0_26] : memref<8x128xf32, #tpu.memory_space<vmem>>, vector<8x128xf32>
    tpu.vector_store %arg11[%c0_25, %c0_26], %34 {strides = array<i32>} : memref<8x128xf32, #tpu.memory_space<vmem>>, vector<8x128xf32>,
    return
  }
  func.func @transform_0(%arg0: i32) -> (i32, i32) {
    %c0_i32 = arith.constant 0 : i32
    %c0_i32_0 = arith.constant 0 : i32
    return %arg0, %c0_i32 : i32, i32
  }
  func.func @transform_1(%arg0: i32) -> (i32, i32) {
    %c0_i32 = arith.constant 0 : i32
    %c0_i32_0 = arith.constant 0 : i32
    return %arg0, %c0_i32 : i32, i32
  }
  func.func @transform_2(%arg0: i32) -> (i32, i32) {
    %c0_i32 = arith.constant 0 : i32
    %c0_i32_0 = arith.constant 0 : i32
    %c0_i32_1 = arith.constant 0 : i32
    return %c0_i32, %c0_i32_0 : i32, i32
  }
  func.func @transform_3(%arg0: i32) -> (i32, i32) {
    %c0_i32 = arith.constant 0 : i32
    %c0_i32_0 = arith.constant 0 : i32
    %c0_i32_1 = arith.constant 0 : i32
    return %c0_i32, %c0_i32_0 : i32, i32
  }
  func.func @transform_4(%arg0: i32) -> (i32, i32) {
    %c0_i32 = arith.constant 0 : i32
    %c0_i32_0 = arith.constant 0 : i32
    %c0_i32_1 = arith.constant 0 : i32
    return %c0_i32, %c0_i32_0 : i32, i32
  }
  func.func @transform_5(%arg0: i32) -> (i32, i32) {
    %c0_i32 = arith.constant 0 : i32
    %c0_i32_0 = arith.constant 0 : i32
    %c0_i32_1 = arith.constant 0 : i32
    return %c0_i32, %c0_i32_0 : i32, i32
  }
  func.func @transform_6(%arg0: i32) -> (i32, i32) {
    %c0_i32 = arith.constant 0 : i32
    %c0_i32_0 = arith.constant 0 : i32
    %c0_i32_1 = arith.constant 0 : i32
    return %c0_i32, %c0_i32_0 : i32, i32
  }
  func.func @transform_7(%arg0: i32) -> (i32, i32) {
    %c0_i32 = arith.constant 0 : i32
    %c0_i32_0 = arith.constant 0 : i32
    %c0_i32_1 = arith.constant 0 : i32
    return %c0_i32, %c0_i32_0 : i32, i32
  }
  func.func @transform_8(%arg0: i32) -> (i32, i32) {
    %c0_i32 = arith.constant 0 : i32
    %c0_i32_0 = arith.constant 0 : i32
    %c0_i32_1 = arith.constant 0 : i32
    return %c0_i32, %c0_i32_0 : i32, i32
  }
  func.func @transform_9(%arg0: i32) -> (i32, i32) {
    %c0_i32 = arith.constant 0 : i32
    %c0_i32_0 = arith.constant 0 : i32
    %c0_i32_1 = arith.constant 0 : i32
    return %c0_i32, %c0_i32_0 : i32, i32
  }
  func.func @transform_10(%arg0: i32) -> (i32, i32) {
    %c0_i32 = arith.constant 0 : i32
    %c0_i32_0 = arith.constant 0 : i32
    return %arg0, %c0_i32 : i32, i32
  }
}

</mosaic_0001>

<llo_original>
// kernel: tpu_custom_call.1
$region0: #{tpu_custom_call.1}
  #allocation0 [shape = 'u32[]', space=smem, size = 0x4, offset = 0x4, fixed_abs, tag = 'smem constant byte address 0x4 - core index']
  #allocation1 [shape = 'u32[144,128]{1,0:T(1,128)}', space=vmem, size = 0x12000, scoped, tag = 'internal scratch']
  #allocation2 [shape = 'f32[1,1]{1,0:T(1,128)S(6)}', space=smem, size = 0x200, scoped, tag = 'scoped memory for tpu_custom_call.1']
  %s0 = inlined_call_operand.vmem [shape: f32[8,16], index: 0, kind: input, shape index: {}]
  %s1 = inlined_call_operand.vmem [shape: f32[8,12], index: 1, kind: input, shape index: {}]
  %s2 = inlined_call_operand.vmem [shape: f32[16,32], index: 2, kind: input, shape index: {}]
  %s3 = inlined_call_operand.vmem [shape: f32[1,32], index: 3, kind: input, shape index: {}]
  %s4 = inlined_call_operand.vmem [shape: f32[12,32], index: 4, kind: input, shape index: {}]
  %s5 = inlined_call_operand.vmem [shape: f32[1,32], index: 5, kind: input, shape index: {}]
  %s6 = inlined_call_operand.vmem [shape: f32[64,32], index: 6, kind: input, shape index: {}]
  %s7 = inlined_call_operand.vmem [shape: f32[1,32], index: 7, kind: input, shape index: {}]
  %s8 = inlined_call_operand.vmem [shape: f32[1,32], index: 8, kind: input, shape index: {}]
  %s9 = inlined_call_operand.<no memory space> [shape: f32[1,1], index: 9, kind: input, shape index: {}]
  %s10 = inlined_call_operand.hbm [shape: f32[8,128], index: 10, kind: output, shape index: {}]
  %s11 = sld [smem:[#allocation0]]
  $region50: #{tpu_custom_call.1} parent=0
    _
  %s13 = ssub.s32 1, %s11
  %s14 = scalar_select 0, %s13, %s11
  %15 = sst [smem:[#allocation2]] %s9
  $region1: #{tpu_custom_call.1} parent=0
    #allocation3 [shape = 'u8[4096]{0}', space=vmem, size = 0x1000, scoped, tag = 'output window, operand 0, single buffered']
    #allocation4 [shape = 's32[1]{0}', space=sflag, size = 0x4, scoped, tag = 'scoped memory for tpu_custom_call.1']
    %16 = vsyncpa [#allocation4], 0
    // Predicated region
    $region2: #{tpu_custom_call.1} parent=1 // pred_check
      _
    $region3: #{tpu_custom_call.1} parent=1 // pred_check_branch
      %18 = sbr.rel (0) target = $region5
    $region4: #{tpu_custom_call.1} parent=1 // pred_region
      _
    $region5: #{tpu_custom_call.1} parent=1 // pred_fallthru
      _
    // Predicated region
    $region6: #{tpu_custom_call.1} parent=1 // pred_check
      _
    $region7: #{tpu_custom_call.1} parent=1 // pred_check_branch
      %20 = sbr.rel (0) target = $region9
    $region8: #{tpu_custom_call.1} parent=1 // pred_region
      _
    $region9: #{tpu_custom_call.1} parent=1 // pred_fallthru
      _
    // Predicated region
    $region10: #{tpu_custom_call.1} parent=1 // pred_check
      _
    $region11: #{tpu_custom_call.1} parent=1 // pred_check_branch
      %22 = sbr.rel (0) target = $region13
    $region12: #{tpu_custom_call.1} parent=1 // pred_region
      _
    $region13: #{tpu_custom_call.1} parent=1 // pred_fallthru
      _
    // Predicated region
    $region14: #{tpu_custom_call.1} parent=1 // pred_check
      _
    $region15: #{tpu_custom_call.1} parent=1 // pred_check_branch
      %24 = sbr.rel (0) target = $region17
    $region16: #{tpu_custom_call.1} parent=1 // pred_region
      _
    $region17: #{tpu_custom_call.1} parent=1 // pred_fallthru
      _
    // Predicated region
    $region18: #{tpu_custom_call.1} parent=1 // pred_check
      _
    $region19: #{tpu_custom_call.1} parent=1 // pred_check_branch
      %26 = sbr.rel (0) target = $region21
    $region20: #{tpu_custom_call.1} parent=1 // pred_region
      _
    $region21: #{tpu_custom_call.1} parent=1 // pred_fallthru
      _
    // Predicated region
    $region22: #{tpu_custom_call.1} parent=1 // pred_check
      _
    $region23: #{tpu_custom_call.1} parent=1 // pred_check_branch
      %28 = sbr.rel (0) target = $region25
    $region24: #{tpu_custom_call.1} parent=1 // pred_region
      _
    $region25: #{tpu_custom_call.1} parent=1 // pred_fallthru
      _
    // Predicated region
    $region26: #{tpu_custom_call.1} parent=1 // pred_check
      _
    $region27: #{tpu_custom_call.1} parent=1 // pred_check_branch
      %30 = sbr.rel (0) target = $region29
    $region28: #{tpu_custom_call.1} parent=1 // pred_region
      _
    $region29: #{tpu_custom_call.1} parent=1 // pred_fallthru
      _
    // Predicated region
    $region30: #{tpu_custom_call.1} parent=1 // pred_check
      _
    $region31: #{tpu_custom_call.1} parent=1 // pred_check_branch
      %32 = sbr.rel (0) target = $region33
    $region32: #{tpu_custom_call.1} parent=1 // pred_region
      _
    $region33: #{tpu_custom_call.1} parent=1 // pred_fallthru
      _
    // Predicated region
    $region34: #{tpu_custom_call.1} parent=1 // pred_check
      _
    $region35: #{tpu_custom_call.1} parent=1 // pred_check_branch
      %34 = sbr.rel (0) target = $region37
    $region36: #{tpu_custom_call.1} parent=1 // pred_region
      _
    $region37: #{tpu_custom_call.1} parent=1 // pred_fallthru
      _
    // Predicated region
    $region38: #{tpu_custom_call.1} parent=1 // pred_check
      _
    $region39: #{tpu_custom_call.1} parent=1 // pred_check_branch
      %36 = sbr.rel (0) target = $region41
    $region40: #{tpu_custom_call.1} parent=1 // pred_region
      _
    $region41: #{tpu_custom_call.1} parent=1 // pred_fallthru
      _
    %v37 = vld [vmem:[%s0] sm:$0xff]
    %v38 = vld [vmem:[%s2] sm:$0xff]
    %v39 = vld [vmem:[%s2 + $0x8] sm:$0xff]
    %v40 = vld [vmem:[%s3] sm:$0x1]
    %v42 = vlaneseq
    %v43 = vshrl.u32 %v42, 7
    %v44 = vsub.s32 0, %v43
    %v45 = vrot.slane %v40, %v44
    %vm47 = vcmask 130048
    %v49 = vsel %vm47, %v37, 0
    %51 = vmatprep.subr.mxu0 0.0
    %52 = vmatpush1.msra.mxu0 %v38
    %53 = vmatprep.subr.mxu0 0.0
    %54 = vmatpush1.msra.mxu0 %v39
    %55 = vmatprep.subr.mxu0 0.0
    %56 = vmatpush1.msra.mxu0 0.0
    %57 = vmatprep.subr.mxu0 0.0
    %58 = vmatpush1.msra.mxu0 0.0
    %59 = vmatprep.subr.mxu0 0.0
    %60 = vmatpush1.msra.mxu0 0.0
    %61 = vmatprep.subr.mxu0 0.0
    %62 = vmatpush1.msra.mxu0 0.0
    %63 = vmatprep.subr.mxu0 0.0
    %64 = vmatpush1.msra.mxu0 0.0
    %65 = vmatprep.subr.mxu0 0.0
    %66 = vmatpush1.msra.mxu0 0.0
    %67 = vmatprep.subr.mxu0 0.0
    %68 = vmatpush1.msra.mxu0 0.0
    %69 = vmatprep.subr.mxu0 0.0
    %70 = vmatpush1.msra.mxu0 0.0
    %71 = vmatprep.subr.mxu0 0.0
    %72 = vmatpush1.msra.mxu0 0.0
    %73 = vmatprep.subr.mxu0 0.0
    %74 = vmatpush1.msra.mxu0 0.0
    %75 = vmatprep.subr.mxu0 0.0
    %76 = vmatpush1.msra.mxu0 0.0
    %77 = vmatprep.subr.mxu0 0.0
    %78 = vmatpush1.msra.mxu0 0.0
    %79 = vmatprep.subr.mxu0 0.0
    %80 = vmatpush1.msra.mxu0 0.0
    %81 = vmatprep.subr.mxu0 0.0
    %82 = vmatpush1.msra.mxu0 0.0
    %83 = vmatprep.subr.mxu0 0.0
    %84 = vmatpush1.msra.mxu0 0.0
    %85 = vmatprep.subr.mxu0 0.0
    %86 = vmatpush1.msra.mxu0 0.0
    %87 = vmatprep.subr.mxu0 0.0
    %88 = vmatpush1.msra.mxu0 0.0
    %89 = vmatprep.subr.mxu0 0.0
    %90 = vmatpush1.msra.mxu0 0.0
    %91 = vmatprep.subr.mxu0 0.0
    %92 = vmatpush1.msra.mxu0 0.0
    %93 = vmatprep.subr.mxu0 0.0
    %94 = vmatpush1.msra.mxu0 0.0
    %95 = vmatprep.subr.mxu0 0.0
    %96 = vmatpush1.msra.mxu0 0.0
    %97 = vmatprep.subr.mxu0 0.0
    %98 = vmatpush1.msra.mxu0 0.0
    %99 = vmatprep.subr.mxu0 0.0
    %100 = vmatpush1.msra.mxu0 0.0
    %101 = vmatprep.subr.mxu0 0.0
    %102 = vmatpush1.msra.mxu0 0.0
    %103 = vmatprep.subr.mxu0 0.0
    %104 = vmatpush1.msra.mxu0 0.0
    %105 = vmatprep.subr.mxu0 0.0
    %106 = vmatpush1.msra.mxu0 0.0
    %107 = vmatprep.subr.mxu0 0.0
    %108 = vmatpush1.msra.mxu0 0.0
    %109 = vmatprep.subr.mxu0 0.0
    %110 = vmatpush1.msra.mxu0 0.0
    %111 = vmatprep.subr.mxu0 0.0
    %112 = vmatpush1.msra.mxu0 0.0
    %113 = vmatprep.subr.mxu0 0.0
    %114 = vmatpush1.msra.mxu0 0.0
    %115 = vmatprep.mubr.f32.mxu0 0.0
    %116 = vmatmul.mubr.f32.gmra.mrb[0].mxu0 %v49
    %v117 = vpop.f32.mrb[0].mxu0
    %v118 = vadd.f32 %v45, %v117
    %v119 = vpop.f32.mrb[0].mxu0
    %120 = vdwg.mxu0
    %v121 = vmax.f32 %v118, 0.0
    %v122 = vld [vmem:[%s1] sm:$0xff]
    %v123 = vld [vmem:[%s4] sm:$0xff]
    %v124 = vld [vmem:[%s4 + $0x8] sm:$0xf]
    %v125 = vld [vmem:[%s5] sm:$0x1]
    %v127 = vlaneseq
    %v128 = vshrl.u32 %v127, 7
    %v129 = vsub.s32 0, %v128
    %v130 = vrot.slane %v125, %v129
    %vm132 = vcmask 97280
    %v134 = vsel %vm132, %v122, 0
    %vm136 = vcmask 1043456
    %v138 = vsel %vm136, %v124, 0
    %140 = vmatprep.subr.mxu0 0.0
    %141 = vmatpush1.msra.mxu0 %v123
    %142 = vmatprep.subr.mxu0 0.0
    %143 = vmatpush1.msra.mxu0 %v138
    %144 = vmatprep.subr.mxu0 0.0
    %145 = vmatpush1.msra.mxu0 0.0
    %146 = vmatprep.subr.mxu0 0.0
    %147 = vmatpush1.msra.mxu0 0.0
    %148 = vmatprep.subr.mxu0 0.0
    %149 = vmatpush1.msra.mxu0 0.0
    %150 = vmatprep.subr.mxu0 0.0
    %151 = vmatpush1.msra.mxu0 0.0
    %152 = vmatprep.subr.mxu0 0.0
    %153 = vmatpush1.msra.mxu0 0.0
    %154 = vmatprep.subr.mxu0 0.0
    %155 = vmatpush1.msra.mxu0 0.0
    %156 = vmatprep.subr.mxu0 0.0
    %157 = vmatpush1.msra.mxu0 0.0
    %158 = vmatprep.subr.mxu0 0.0
    %159 = vmatpush1.msra.mxu0 0.0
    %160 = vmatprep.subr.mxu0 0.0
    %161 = vmatpush1.msra.mxu0 0.0
    %162 = vmatprep.subr.mxu0 0.0
    %163 = vmatpush1.msra.mxu0 0.0
    %164 = vmatprep.subr.mxu0 0.0
    %165 = vmatpush1.msra.mxu0 0.0
    %166 = vmatprep.subr.mxu0 0.0
    %167 = vmatpush1.msra.mxu0 0.0
    %168 = vmatprep.subr.mxu0 0.0
    %169 = vmatpush1.msra.mxu0 0.0
    %170 = vmatprep.subr.mxu0 0.0
    %171 = vmatpush1.msra.mxu0 0.0
    %172 = vmatprep.subr.mxu0 0.0
    %173 = vmatpush1.msra.mxu0 0.0
    %174 = vmatprep.subr.mxu0 0.0
    %175 = vmatpush1.msra.mxu0 0.0
    %176 = vmatprep.subr.mxu0 0.0
    %177 = vmatpush1.msra.mxu0 0.0
    %178 = vmatprep.subr.mxu0 0.0
    %179 = vmatpush1.msra.mxu0 0.0
    %180 = vmatprep.subr.mxu0 0.0
    %181 = vmatpush1.msra.mxu0 0.0
    %182 = vmatprep.subr.mxu0 0.0
    %183 = vmatpush1.msra.mxu0 0.0
    %184 = vmatprep.subr.mxu0 0.0
    %185 = vmatpush1.msra.mxu0 0.0
    %186 = vmatprep.subr.mxu0 0.0
    %187 = vmatpush1.msra.mxu0 0.0
    %188 = vmatprep.subr.mxu0 0.0
    %189 = vmatpush1.msra.mxu0 0.0
    %190 = vmatprep.subr.mxu0 0.0
    %191 = vmatpush1.msra.mxu0 0.0
    %192 = vmatprep.subr.mxu0 0.0
    %193 = vmatpush1.msra.mxu0 0.0
    %194 = vmatprep.subr.mxu0 0.0
    %195 = vmatpush1.msra.mxu0 0.0
    %196 = vmatprep.subr.mxu0 0.0
    %197 = vmatpush1.msra.mxu0 0.0
    %198 = vmatprep.subr.mxu0 0.0
    %199 = vmatpush1.msra.mxu0 0.0
    %200 = vmatprep.subr.mxu0 0.0
    %201 = vmatpush1.msra.mxu0 0.0
    %202 = vmatprep.subr.mxu0 0.0
    %203 = vmatpush1.msra.mxu0 0.0
    %204 = vmatprep.mubr.f32.mxu0 0.0
    %205 = vmatmul.mubr.f32.gmra.mrb[0].mxu0 %v134
    %v206 = vpop.f32.mrb[0].mxu0
    %v207 = vadd.f32 %v130, %v206
    %v208 = vpop.f32.mrb[0].mxu0
    %209 = vdwg.mxu0
    %v210 = vmax.f32 %v207, 0.0
    %212 = vrot.lane.b32.xlu0 %v210, 32
    %v213 = vpop.permute.xlu0 %212
    %vm215 = vcmask 261120
    %v216 = vsel %vm215, %v121, %v213
    %v217 = vld [vmem:[%s6] sm:$0xff]
    %v218 = vld [vmem:[%s6 + $0x8] sm:$0xff]
    %v219 = vld [vmem:[%s6 + $0x10] sm:$0xff]
    %v220 = vld [vmem:[%s6 + $0x18] sm:$0xff]
    %v221 = vld [vmem:[%s6 + $0x20] sm:$0xff]
    %v222 = vld [vmem:[%s6 + $0x28] sm:$0xff]
    %v223 = vld [vmem:[%s6 + $0x30] sm:$0xff]
    %v224 = vld [vmem:[%s6 + $0x38] sm:$0xff]
    %v225 = vld [vmem:[%s7] sm:$0x1]
    %v227 = vlaneseq
    %v228 = vshrl.u32 %v227, 7
    %v229 = vsub.s32 0, %v228
    %v230 = vrot.slane %v225, %v229
    %vm232 = vcmask 523264
    %v234 = vsel %vm232, %v216, 0
    %236 = vmatprep.subr.mxu0 0.0
    %237 = vmatpush1.msra.mxu0 %v217
    %238 = vmatprep.subr.mxu0 0.0
    %239 = vmatpush1.msra.mxu0 %v218
    %240 = vmatprep.subr.mxu0 0.0
    %241 = vmatpush1.msra.mxu0 %v219
    %242 = vmatprep.subr.mxu0 0.0
    %243 = vmatpush1.msra.mxu0 %v220
    %244 = vmatprep.subr.mxu0 0.0
    %245 = vmatpush1.msra.mxu0 %v221
    %246 = vmatprep.subr.mxu0 0.0
    %247 = vmatpush1.msra.mxu0 %v222
    %248 = vmatprep.subr.mxu0 0.0
    %249 = vmatpush1.msra.mxu0 %v223
    %250 = vmatprep.subr.mxu0 0.0
    %251 = vmatpush1.msra.mxu0 %v224
    %252 = vmatprep.subr.mxu0 0.0
    %253 = vmatpush1.msra.mxu0 0.0
    %254 = vmatprep.subr.mxu0 0.0
    %255 = vmatpush1.msra.mxu0 0.0
    %256 = vmatprep.subr.mxu0 0.0
    %257 = vmatpush1.msra.mxu0 0.0
    %258 = vmatprep.subr.mxu0 0.0
    %259 = vmatpush1.msra.mxu0 0.0
    %260 = vmatprep.subr.mxu0 0.0
    %261 = vmatpush1.msra.mxu0 0.0
    %262 = vmatprep.subr.mxu0 0.0
    %263 = vmatpush1.msra.mxu0 0.0
    %264 = vmatprep.subr.mxu0 0.0
    %265 = vmatpush1.msra.mxu0 0.0
    %266 = vmatprep.subr.mxu0 0.0
    %267 = vmatpush1.msra.mxu0 0.0
    %268 = vmatprep.subr.mxu0 0.0
    %269 = vmatpush1.msra.mxu0 0.0
    %270 = vmatprep.subr.mxu0 0.0
    %271 = vmatpush1.msra.mxu0 0.0
    %272 = vmatprep.subr.mxu0 0.0
    %273 = vmatpush1.msra.mxu0 0.0
    %274 = vmatprep.subr.mxu0 0.0
    %275 = vmatpush1.msra.mxu0 0.0
    %276 = vmatprep.subr.mxu0 0.0
    %277 = vmatpush1.msra.mxu0 0.0
    %278 = vmatprep.subr.mxu0 0.0
    %279 = vmatpush1.msra.mxu0 0.0
    %280 = vmatprep.subr.mxu0 0.0
    %281 = vmatpush1.msra.mxu0 0.0
    %282 = vmatprep.subr.mxu0 0.0
    %283 = vmatpush1.msra.mxu0 0.0
    %284 = vmatprep.subr.mxu0 0.0
    %285 = vmatpush1.msra.mxu0 0.0
    %286 = vmatprep.subr.mxu0 0.0
    %287 = vmatpush1.msra.mxu0 0.0
    %288 = vmatprep.subr.mxu0 0.0
    %289 = vmatpush1.msra.mxu0 0.0
    %290 = vmatprep.subr.mxu0 0.0
    %291 = vmatpush1.msra.mxu0 0.0
    %292 = vmatprep.subr.mxu0 0.0
    %293 = vmatpush1.msra.mxu0 0.0
    %294 = vmatprep.subr.mxu0 0.0
    %295 = vmatpush1.msra.mxu0 0.0
    %296 = vmatprep.subr.mxu0 0.0
    %297 = vmatpush1.msra.mxu0 0.0
    %298 = vmatprep.subr.mxu0 0.0
    %299 = vmatpush1.msra.mxu0 0.0
    %300 = vmatprep.mubr.f32.mxu0 0.0
    %301 = vmatmul.mubr.f32.gmra.mrb[0].mxu0 %v234
    %v302 = vpop.f32.mrb[0].mxu0
    %v303 = vadd.f32 %v230, %v302
    %v304 = vpop.f32.mrb[0].mxu0
    %305 = vdwg.mxu0
    %v306 = vmax.f32 %v303, 0.0
    %v307 = vld [vmem:[%s8] sm:$0x1]
    %v309 = vlaneseq
    %v310 = vshrl.u32 %v309, 7
    %v311 = vsub.s32 0, %v310
    %v312 = vrot.slane %v307, %v311
    %v314 = vmul.f32 %v306, %v312
    %v315 = vsel %vm215, %v314, 0.0
    %316 = vadd.xlane.f32.xlu0 %v315
    %v317 = vpop.xlane.xlu0 %316
    %s318 = sld [smem:[#allocation2]]
    %v319 = vstv %s318
    %v320 = vadd.f32 %v317, %v319
    %v321 = vsel %vm232, %v216, %v320
    %322 = vst [vmem:[#allocation3] sm:$0xff] %v321
    // Predicated region
    $region42: #{tpu_custom_call.1} parent=1 // pred_check
      _
    $region43: #{tpu_custom_call.1} parent=1 // pred_check_branch
      %324 = sbr.rel (0) target = $region45
    $region44: #{tpu_custom_call.1} parent=1 // pred_region
      %s326 = ssub.s32 128, 128
      %327 = vsyncadd [#allocation4], %s326
      %s329 = sshll.u32 [#allocation3], 4
      %s330 = int_to_ptr.vmem [resolvable:$true] %s329
      %332 = dma.vmem_to_hbm [thread:$0]  %s330, 128, %s10, [#allocation4]
    $region45: #{tpu_custom_call.1} parent=1 // pred_fallthru
      _
    // Predicated region
    $region46: #{tpu_custom_call.1} parent=1 // pred_check
      _
    $region47: #{tpu_custom_call.1} parent=1 // pred_check_branch
      %334 = sbr.rel (0) target = $region49
    $region48: #{tpu_custom_call.1} parent=1 // pred_region
      %335 = dma.done [#allocation4], 128
    $region49: #{tpu_custom_call.1} parent=1 // pred_fallthru
      _
    %336 = vsyncpa [#allocation4], 1

</llo_original>
